<compile_context>
chip_gen: v5e
topology: v5e:2x2
jax: 0.10.0
libtpu: 0.0.40
codegen_flags: <defaults>
</compile_context>

<pallas_src>
import jax
import jax.numpy as jnp
from jax.experimental import pallas as pl
from jax.experimental.pallas import tpu as pltpu

LANE = 128
SUBLANE = 8


def mlp_kernel(x_ref, w1_ref, b1_ref, w2_ref, b2_ref, w3_ref, b3_ref, o_ref):
    # fc1: bf16 MXU matmul, f32 accumulation; bias-add + ReLU on the VPU in f32.
    h1 = jnp.dot(x_ref[...], w1_ref[...], preferred_element_type=jnp.float32)
    h1 = jnp.maximum(h1 + b1_ref[...], 0.0)
    # fc2 + ReLU (activation re-cast to bf16 only at the MXU input).
    h2 = jnp.dot(h1.astype(jnp.bfloat16), w2_ref[...],
                 preferred_element_type=jnp.float32)
    h2 = jnp.maximum(h2 + b2_ref[...], 0.0)
    # fc3 (lane-padded logits, no activation).
    out = jnp.dot(h2.astype(jnp.bfloat16), w3_ref[...],
                  preferred_element_type=jnp.float32)
    o_ref[...] = out + b3_ref[...]
    # TODO(synk): training-mode dropout would need pltpu.prng_seed /
    # pltpu.prng_random_bits; eval-mode (identity) semantics are implemented.


def mlp_forward(x, params, *, block_batch=256):
    w1, b1, w2, b2, w3, b3 = params
    batch, input_dim = x.shape
    h1_dim = w1.shape[1]
    h2_dim = w2.shape[1]
    out_dim = w3.shape[1]

    # Lane-dense output: zero-pad fc3 columns up to a multiple of 128
    # (padded columns are exactly zero; the wrapper slices them away below).
    out_pad = max(LANE, ((out_dim + LANE - 1) // LANE) * LANE)
    w3p = jnp.zeros((h2_dim, out_pad), w3.dtype).at[:, :out_dim].set(w3)
    b3p = jnp.zeros((1, out_pad), b3.dtype).at[:, :out_dim].set(b3)

    # bf16 matmul operands; biases (and accumulation) stay f32.
    x_bf = x.astype(jnp.bfloat16)
    w1_bf = w1.astype(jnp.bfloat16)
    w2_bf = w2.astype(jnp.bfloat16)
    w3_bf = w3p.astype(jnp.bfloat16)

    # Batch tile: MXU-sized when the batch is large, whole batch when small.
    # (A tile equal to the full batch always satisfies the (8,128) block rule.)
    if batch > block_batch:
        tb = block_batch
    else:
        tb = batch
    grid = (pl.cdiv(batch, tb),)

    def const_spec(shape):
        return pl.BlockSpec(shape, lambda i: (0,) * len(shape))

    flops = 2 * batch * (input_dim * h1_dim + h1_dim * h2_dim + h2_dim * out_pad)
    bytes_accessed = (
        x_bf.size * 2 + w1_bf.size * 2 + w2_bf.size * 2 + w3_bf.size * 2
        + (b1.size + b2.size + b3p.size) * 4 + batch * out_pad * 4)

    out = pl.pallas_call(
        mlp_kernel,
        out_shape=jax.ShapeDtypeStruct((batch, out_pad), jnp.float32),
        grid=grid,
        in_specs=[
            pl.BlockSpec((tb, input_dim), lambda i: (i, 0)),  # x: batch-tiled
            const_spec((input_dim, h1_dim)),                  # W1 (VMEM-resident)
            const_spec((1, h1_dim)),                          # b1
            const_spec((h1_dim, h2_dim)),                     # W2
            const_spec((1, h2_dim)),                          # b2
            const_spec((h2_dim, out_pad)),                    # W3 (lane-padded)
            const_spec((1, out_pad)),                         # b3 (lane-padded)
        ],
        out_specs=pl.BlockSpec((tb, out_pad), lambda i: (i, 0)),
        compiler_params=pltpu.CompilerParams(
            dimension_semantics=("parallel",),
            vmem_limit_bytes=64 << 20,
        ),
        cost_estimate=pl.CostEstimate(
            flops=flops, transcendentals=0, bytes_accessed=bytes_accessed),
    )(x_bf, w1_bf, b1, w2_bf, b2, w3_bf, b3p)

    return out[:, :out_dim]


def init_params(key, input_dim, hidden_dim, output_dim):
    """Deterministic PyTorch-Linear-style init: U(-1/sqrt(fan_in), 1/sqrt(fan_in))."""
    dims = [(input_dim, hidden_dim),
            (hidden_dim, hidden_dim // 2),
            (hidden_dim // 2, output_dim)]
    params = []
    for (fan_in, fan_out) in dims:
        key, kw, kb = jax.random.split(key, 3)
        bound = 1.0 / jnp.sqrt(fan_in)
        w = jax.random.uniform(kw, (fan_in, fan_out), jnp.float32, -bound, bound)
        b = jax.random.uniform(kb, (1, fan_out), jnp.float32, -bound, bound)
        params += [w, b]
    return tuple(params)


def mlp_reference(x, params):
    w1, b1, w2, b2, w3, b3 = params
    h1 = jnp.maximum(x @ w1 + b1, 0.0)
    h2 = jnp.maximum(h1 @ w2 + b2, 0.0)
    return h2 @ w3 + b3


if __name__ == "__main__":
    # Small shapes consistent with the module (scaled down from 2048/512/10).
    batch, input_dim, hidden_dim, output_dim = 8, 256, 64, 10

    key = jax.random.PRNGKey(0)
    key, kx = jax.random.split(key)
    x = jax.random.normal(kx, (batch, input_dim), jnp.float32)
    params = init_params(key, input_dim, hidden_dim, output_dim)

    out = mlp_forward(x, params)
    jax.block_until_ready(out)

    ref = mlp_reference(x, params)
    assert out.shape == (batch, output_dim)
    # Matmul operands are bf16 (f32 accumulation), so allow a few 1e-3 absolute.
    assert jnp.allclose(out, ref, atol=5e-2, rtol=5e-2)

    print("KERNEL_OK")
</pallas_src>

<mosaic_0001>
module attributes {stable_mosaic.version = 11 : i64} {
  func.func @mlp_kernel(%arg0: i32, %arg1: memref<8x256xbf16, #tpu.memory_space<vmem>>, %arg2: memref<256x64xbf16, #tpu.memory_space<vmem>>, %arg3: memref<1x64xf32, #tpu.memory_space<vmem>>, %arg4: memref<64x32xbf16, #tpu.memory_space<vmem>>, %arg5: memref<1x32xf32, #tpu.memory_space<vmem>>, %arg6: memref<32x128xbf16, #tpu.memory_space<vmem>>, %arg7: memref<1x128xf32, #tpu.memory_space<vmem>>, %arg8: memref<8x128xf32, #tpu.memory_space<vmem>>) attributes {dimension_semantics = [#tpu.dimension_semantics<parallel>], iteration_bounds = array<i64: 1>, scalar_prefetch = 0 : i64, scratch_operands = 0 : i64, tpu.core_type = #tpu.core_type<tc>, window_params = [{transform_indices = @transform_0, window_bounds = array<i64: 8, 256>}, {pipeline_mode = #tpu.pipeline_mode<synchronous>, transform_indices = @transform_1, window_bounds = array<i64: 256, 64>}, {pipeline_mode = #tpu.pipeline_mode<synchronous>, transform_indices = @transform_2, window_bounds = array<i64: 1, 64>}, {pipeline_mode = #tpu.pipeline_mode<synchronous>, transform_indices = @transform_3, window_bounds = array<i64: 64, 32>}, {pipeline_mode = #tpu.pipeline_mode<synchronous>, transform_indices = @transform_4, window_bounds = array<i64: 1, 32>}, {pipeline_mode = #tpu.pipeline_mode<synchronous>, transform_indices = @transform_5, window_bounds = array<i64: 32, 128>}, {pipeline_mode = #tpu.pipeline_mode<synchronous>, transform_indices = @transform_6, window_bounds = array<i64: 1, 128>}, {transform_indices = @transform_7, window_bounds = array<i64: 8, 128>}]} {
    %c0 = arith.constant 0 : index
    %c0_0 = arith.constant 0 : index
    %0 = vector.load %arg1[%c0, %c0_0] : memref<8x256xbf16, #tpu.memory_space<vmem>>, vector<8x256xbf16>
    %c0_1 = arith.constant 0 : index
    %c0_2 = arith.constant 0 : index
    %1 = vector.load %arg2[%c0_1, %c0_2] : memref<256x64xbf16, #tpu.memory_space<vmem>>, vector<256x64xbf16>
    %cst = arith.constant dense<0.000000e+00> : vector<8x64xf32>
    %2 = tpu.matmul %0, %1, %cst {dimension_numbers = #tpu.dot_dimension_numbers<[1], [0], [0], [1], [0, 0, 1, 1], [], []>} : vector<8x256xbf16>, vector<256x64xbf16>, vector<8x64xf32> -> vector<8x64xf32>
    %c0_3 = arith.constant 0 : index
    %c0_4 = arith.constant 0 : index
    %3 = vector.load %arg3[%c0_3, %c0_4] : memref<1x64xf32, #tpu.memory_space<vmem>>, vector<1x64xf32>
    %4 = vector.broadcast %3 : vector<1x64xf32> to vector<8x64xf32>
    %5 = arith.addf %2, %4 : vector<8x64xf32>
    %cst_5 = arith.constant 0.000000e+00 : f32
    %6 = vector.broadcast %cst_5 : f32 to vector<8x64xf32>
    %7 = arith.maximumf %5, %6 : vector<8x64xf32>
    %8 = arith.truncf %7 : vector<8x64xf32> to vector<8x64xbf16>
    %c0_6 = arith.constant 0 : index
    %c0_7 = arith.constant 0 : index
    %9 = vector.load %arg4[%c0_6, %c0_7] : memref<64x32xbf16, #tpu.memory_space<vmem>>, vector<64x32xbf16>
    %cst_8 = arith.constant dense<0.000000e+00> : vector<8x32xf32>
    %10 = tpu.matmul %8, %9, %cst_8 {dimension_numbers = #tpu.dot_dimension_numbers<[1], [0], [0], [1], [0, 0, 1, 1], [], []>} : vector<8x64xbf16>, vector<64x32xbf16>, vector<8x32xf32> -> vector<8x32xf32>
    %c0_9 = arith.constant 0 : index
    %c0_10 = arith.constant 0 : index
    %11 = vector.load %arg5[%c0_9, %c0_10] : memref<1x32xf32, #tpu.memory_space<vmem>>, vector<1x32xf32>
    %12 = vector.broadcast %11 : vector<1x32xf32> to vector<8x32xf32>
    %13 = arith.addf %10, %12 : vector<8x32xf32>
    %cst_11 = arith.constant 0.000000e+00 : f32
    %14 = vector.broadcast %cst_11 : f32 to vector<8x32xf32>
    %15 = arith.maximumf %13, %14 : vector<8x32xf32>
    %16 = arith.truncf %15 : vector<8x32xf32> to vector<8x32xbf16>
    %c0_12 = arith.constant 0 : index
    %c0_13 = arith.constant 0 : index
    %17 = vector.load %arg6[%c0_12, %c0_13] : memref<32x128xbf16, #tpu.memory_space<vmem>>, vector<32x128xbf16>
    %cst_14 = arith.constant dense<0.000000e+00> : vector<8x128xf32>
    %18 = tpu.matmul %16, %17, %cst_14 {dimension_numbers = #tpu.dot_dimension_numbers<[1], [0], [0], [1], [0, 0, 1, 1], [], []>} : vector<8x32xbf16>, vector<32x128xbf16>, vector<8x128xf32> -> vector<8x128xf32>
    %c0_15 = arith.constant 0 : index
    %c0_16 = arith.constant 0 : index
    %19 = vector.load %arg7[%c0_15, %c0_16] : memref<1x128xf32, #tpu.memory_space<vmem>>, vector<1x128xf32>
    %20 = vector.broadcast %19 : vector<1x128xf32> to vector<8x128xf32>
    %21 = arith.addf %18, %20 : vector<8x128xf32>
    %c0_17 = arith.constant 0 : index
    %c0_18 = arith.constant 0 : index
    %22 = vector.load %arg8[%c0_17, %c0_18] : memref<8x128xf32, #tpu.memory_space<vmem>>, vector<8x128xf32>
    tpu.vector_store %arg8[%c0_17, %c0_18], %21 {strides = array<i32>} : memref<8x128xf32, #tpu.memory_space<vmem>>, vector<8x128xf32>,
    return
  }
  func.func @transform_0(%arg0: i32) -> (i32, i32) {
    %c0_i32 = arith.constant 0 : i32
    %c0_i32_0 = arith.constant 0 : i32
    return %arg0, %c0_i32 : i32, i32
  }
  func.func @transform_1(%arg0: i32) -> (i32, i32) {
    %c0_i32 = arith.constant 0 : i32
    %c0_i32_0 = arith.constant 0 : i32
    %c0_i32_1 = arith.constant 0 : i32
    return %c0_i32, %c0_i32_0 : i32, i32
  }
  func.func @transform_2(%arg0: i32) -> (i32, i32) {
    %c0_i32 = arith.constant 0 : i32
    %c0_i32_0 = arith.constant 0 : i32
    %c0_i32_1 = arith.constant 0 : i32
    return %c0_i32, %c0_i32_0 : i32, i32
  }
  func.func @transform_3(%arg0: i32) -> (i32, i32) {
    %c0_i32 = arith.constant 0 : i32
    %c0_i32_0 = arith.constant 0 : i32
    %c0_i32_1 = arith.constant 0 : i32
    return %c0_i32, %c0_i32_0 : i32, i32
  }
  func.func @transform_4(%arg0: i32) -> (i32, i32) {
    %c0_i32 = arith.constant 0 : i32
    %c0_i32_0 = arith.constant 0 : i32
    %c0_i32_1 = arith.constant 0 : i32
    return %c0_i32, %c0_i32_0 : i32, i32
  }
  func.func @transform_5(%arg0: i32) -> (i32, i32) {
    %c0_i32 = arith.constant 0 : i32
    %c0_i32_0 = arith.constant 0 : i32
    %c0_i32_1 = arith.constant 0 : i32
    return %c0_i32, %c0_i32_0 : i32, i32
  }
  func.func @transform_6(%arg0: i32) -> (i32, i32) {
    %c0_i32 = arith.constant 0 : i32
    %c0_i32_0 = arith.constant 0 : i32
    %c0_i32_1 = arith.constant 0 : i32
    return %c0_i32, %c0_i32_0 : i32, i32
  }
  func.func @transform_7(%arg0: i32) -> (i32, i32) {
    %c0_i32 = arith.constant 0 : i32
    %c0_i32_0 = arith.constant 0 : i32
    return %arg0, %c0_i32 : i32, i32
  }
}

</mosaic_0001>

<llo_original>
// kernel: tpu_custom_call.1
$region0: #{tpu_custom_call.1}
  #allocation0 [shape = 'u32[]', space=smem, size = 0x4, offset = 0x4, fixed_abs, tag = 'smem constant byte address 0x4 - core index']
  #allocation1 [shape = 'u32[72,128]{1,0:T(1,128)}', space=vmem, size = 0x9000, scoped, tag = 'internal scratch']
  %s0 = inlined_call_operand.vmem [shape: bf16[8,256], index: 0, kind: input, shape index: {}]
  %s1 = inlined_call_operand.vmem [shape: bf16[256,64], index: 1, kind: input, shape index: {}]
  %s2 = inlined_call_operand.vmem [shape: f32[1,64], index: 2, kind: input, shape index: {}]
  %s3 = inlined_call_operand.vmem [shape: bf16[64,32], index: 3, kind: input, shape index: {}]
  %s4 = inlined_call_operand.vmem [shape: f32[1,32], index: 4, kind: input, shape index: {}]
  %s5 = inlined_call_operand.vmem [shape: bf16[32,128], index: 5, kind: input, shape index: {}]
  %s6 = inlined_call_operand.vmem [shape: f32[1,128], index: 6, kind: input, shape index: {}]
  %s7 = inlined_call_operand.hbm [shape: f32[8,128], index: 7, kind: output, shape index: {}]
  %s8 = sld [smem:[#allocation0]]
  $region38: #{tpu_custom_call.1} parent=0
    _
  %s10 = ssub.s32 1, %s8
  %s11 = scalar_select 0, %s10, %s8
  $region1: #{tpu_custom_call.1} parent=0
    #allocation2 [shape = 'u8[4096]{0}', space=vmem, size = 0x1000, scoped, tag = 'output window, operand 0, single buffered']
    #allocation3 [shape = 's32[1]{0}', space=sflag, size = 0x4, scoped, tag = 'scoped memory for tpu_custom_call.1']
    %12 = vsyncpa [#allocation3], 0
    // Predicated region
    $region2: #{tpu_custom_call.1} parent=1 // pred_check
      _
    $region3: #{tpu_custom_call.1} parent=1 // pred_check_branch
      %14 = sbr.rel (0) target = $region5
    $region4: #{tpu_custom_call.1} parent=1 // pred_region
      _
    $region5: #{tpu_custom_call.1} parent=1 // pred_fallthru
      _
    // Predicated region
    $region6: #{tpu_custom_call.1} parent=1 // pred_check
      _
    $region7: #{tpu_custom_call.1} parent=1 // pred_check_branch
      %16 = sbr.rel (0) target = $region9
    $region8: #{tpu_custom_call.1} parent=1 // pred_region
      _
    $region9: #{tpu_custom_call.1} parent=1 // pred_fallthru
      _
    // Predicated region
    $region10: #{tpu_custom_call.1} parent=1 // pred_check
      _
    $region11: #{tpu_custom_call.1} parent=1 // pred_check_branch
      %18 = sbr.rel (0) target = $region13
    $region12: #{tpu_custom_call.1} parent=1 // pred_region
      _
    $region13: #{tpu_custom_call.1} parent=1 // pred_fallthru
      _
    // Predicated region
    $region14: #{tpu_custom_call.1} parent=1 // pred_check
      _
    $region15: #{tpu_custom_call.1} parent=1 // pred_check_branch
      %20 = sbr.rel (0) target = $region17
    $region16: #{tpu_custom_call.1} parent=1 // pred_region
      _
    $region17: #{tpu_custom_call.1} parent=1 // pred_fallthru
      _
    // Predicated region
    $region18: #{tpu_custom_call.1} parent=1 // pred_check
      _
    $region19: #{tpu_custom_call.1} parent=1 // pred_check_branch
      %22 = sbr.rel (0) target = $region21
    $region20: #{tpu_custom_call.1} parent=1 // pred_region
      _
    $region21: #{tpu_custom_call.1} parent=1 // pred_fallthru
      _
    // Predicated region
    $region22: #{tpu_custom_call.1} parent=1 // pred_check
      _
    $region23: #{tpu_custom_call.1} parent=1 // pred_check_branch
      %24 = sbr.rel (0) target = $region25
    $region24: #{tpu_custom_call.1} parent=1 // pred_region
      _
    $region25: #{tpu_custom_call.1} parent=1 // pred_fallthru
      _
    // Predicated region
    $region26: #{tpu_custom_call.1} parent=1 // pred_check
      _
    $region27: #{tpu_custom_call.1} parent=1 // pred_check_branch
      %26 = sbr.rel (0) target = $region29
    $region28: #{tpu_custom_call.1} parent=1 // pred_region
      _
    $region29: #{tpu_custom_call.1} parent=1 // pred_fallthru
      _
    %v28 = vld [vmem:[%s0] sm:$0xff]
    %v29 = vld [vmem:[%s1] sm:$0xf]
    %v30 = vld [vmem:[%s1 + $0x4] sm:$0xf]
    %v31 = vld [vmem:[%s1 + $0x8] sm:$0xf]
    %v32 = vld [vmem:[%s1 + $0xc] sm:$0xf]
    %v33 = vld [vmem:[%s1 + $0x10] sm:$0xf]
    %v34 = vld [vmem:[%s1 + $0x14] sm:$0xf]
    %v35 = vld [vmem:[%s1 + $0x18] sm:$0xf]
    %v36 = vld [vmem:[%s1 + $0x1c] sm:$0xf]
    %v37 = vld [vmem:[%s1 + $0x20] sm:$0xf]
    %v38 = vld [vmem:[%s1 + $0x24] sm:$0xf]
    %v39 = vld [vmem:[%s1 + $0x28] sm:$0xf]
    %v40 = vld [vmem:[%s1 + $0x2c] sm:$0xf]
    %v41 = vld [vmem:[%s1 + $0x30] sm:$0xf]
    %v42 = vld [vmem:[%s1 + $0x34] sm:$0xf]
    %v43 = vld [vmem:[%s1 + $0x38] sm:$0xf]
    %v44 = vld [vmem:[%s1 + $0x3c] sm:$0xf]
    %v45 = vld [vmem:[%s1 + $0x40] sm:$0xf]
    %v46 = vld [vmem:[%s1 + $0x44] sm:$0xf]
    %v47 = vld [vmem:[%s1 + $0x48] sm:$0xf]
    %v48 = vld [vmem:[%s1 + $0x4c] sm:$0xf]
    %v49 = vld [vmem:[%s1 + $0x50] sm:$0xf]
    %v50 = vld [vmem:[%s1 + $0x54] sm:$0xf]
    %v51 = vld [vmem:[%s1 + $0x58] sm:$0xf]
    %v52 = vld [vmem:[%s1 + $0x5c] sm:$0xf]
    %v53 = vld [vmem:[%s1 + $0x60] sm:$0xf]
    %v54 = vld [vmem:[%s1 + $0x64] sm:$0xf]
    %v55 = vld [vmem:[%s1 + $0x68] sm:$0xf]
    %v56 = vld [vmem:[%s1 + $0x6c] sm:$0xf]
    %v57 = vld [vmem:[%s1 + $0x70] sm:$0xf]
    %v58 = vld [vmem:[%s1 + $0x74] sm:$0xf]
    %v59 = vld [vmem:[%s1 + $0x78] sm:$0xf]
    %v60 = vld [vmem:[%s1 + $0x7c] sm:$0xf]
    %v61 = vld [vmem:[%s2] sm:$0x1]
    %v63 = vperm.slane %v61, 0
    %v66 = vunpack.c.l.b16 %v28
    %v67 = vunpack.c.h.b16 %v28
    %v68 = vpack.c.b16 %v66, %v66
    %v69 = vpack.c.b16 %v67, %v67
    %v104 = vunpack.c.l.b16 %v29
    %v105 = vunpack.c.l.b16 %v30
    %v106 = vunpack.c.l.b16 %v31
    %v107 = vunpack.c.l.b16 %v32
    %v108 = vunpack.c.l.b16 %v33
    %v109 = vunpack.c.l.b16 %v34
    %v110 = vunpack.c.l.b16 %v35
    %v111 = vunpack.c.l.b16 %v36
    %v112 = vunpack.c.l.b16 %v37
    %v113 = vunpack.c.l.b16 %v38
    %v114 = vunpack.c.l.b16 %v39
    %v115 = vunpack.c.l.b16 %v40
    %v116 = vunpack.c.l.b16 %v41
    %v117 = vunpack.c.l.b16 %v42
    %v118 = vunpack.c.l.b16 %v43
    %v119 = vunpack.c.l.b16 %v44
    %v120 = vunpack.c.l.b16 %v45
    %v121 = vunpack.c.l.b16 %v46
    %v122 = vunpack.c.l.b16 %v47
    %v123 = vunpack.c.l.b16 %v48
    %v124 = vunpack.c.l.b16 %v49
    %v125 = vunpack.c.l.b16 %v50
    %v126 = vunpack.c.l.b16 %v51
    %v127 = vunpack.c.l.b16 %v52
    %v128 = vunpack.c.l.b16 %v53
    %v129 = vunpack.c.l.b16 %v54
    %v130 = vunpack.c.l.b16 %v55
    %v131 = vunpack.c.l.b16 %v56
    %v132 = vunpack.c.l.b16 %v57
    %v133 = vunpack.c.l.b16 %v58
    %v134 = vunpack.c.l.b16 %v59
    %v135 = vunpack.c.l.b16 %v60
    %v136 = vpack.c.b16 %v105, %v104
    %v137 = vpack.c.b16 %v107, %v106
    %v138 = vpack.c.b16 %v109, %v108
    %v139 = vpack.c.b16 %v111, %v110
    %v140 = vpack.c.b16 %v113, %v112
    %v141 = vpack.c.b16 %v115, %v114
    %v142 = vpack.c.b16 %v117, %v116
    %v143 = vpack.c.b16 %v119, %v118
    %v144 = vpack.c.b16 %v121, %v120
    %v145 = vpack.c.b16 %v123, %v122
    %v146 = vpack.c.b16 %v125, %v124
    %v147 = vpack.c.b16 %v127, %v126
    %v148 = vpack.c.b16 %v129, %v128
    %v149 = vpack.c.b16 %v131, %v130
    %v150 = vpack.c.b16 %v133, %v132
    %v151 = vpack.c.b16 %v135, %v134
    %168 = vmatpush.bf16.msra.mxu0 %v143
    %169 = vmatpush.bf16.msra.mxu0 %v142
    %170 = vmatpush.bf16.msra.mxu0 %v141
    %171 = vmatpush.bf16.msra.mxu0 %v140
    %172 = vmatpush.bf16.msra.mxu0 %v139
    %173 = vmatpush.bf16.msra.mxu0 %v138
    %174 = vmatpush.bf16.msra.mxu0 %v137
    %175 = vmatpush.bf16.msra.mxu0 %v136
    %176 = vmatmul.bf16.gmra.mxu0 %v68
    %v177 = vpop.f32.mrf.mxu0
    %v178 = vadd.f32 %v63, %v177
    %v179 = vpop.f32.mrf.mxu0
    %180 = vdwg.mxu0
    %181 = vmatpush.bf16.msra.mxu0 %v151
    %182 = vmatpush.bf16.msra.mxu0 %v150
    %183 = vmatpush.bf16.msra.mxu0 %v149
    %184 = vmatpush.bf16.msra.mxu0 %v148
    %185 = vmatpush.bf16.msra.mxu0 %v147
    %186 = vmatpush.bf16.msra.mxu0 %v146
    %187 = vmatpush.bf16.msra.mxu0 %v145
    %188 = vmatpush.bf16.msra.mxu0 %v144
    %189 = vmatmul.bf16.gmra.mxu0 %v69
    %v190 = vpop.f32.mrf.mxu0
    %v191 = vadd.f32 %v178, %v190
    %v192 = vpop.f32.mrf.mxu0
    %193 = vdwg.mxu0
    %v194 = vmax.f32 %v191, 0.0
    %v195 = vpack.c.bf16 %v194, %v194
    %v196 = vld [vmem:[%s3] sm:$0xf]
    %v197 = vld [vmem:[%s3 + $0x4] sm:$0xf]
    %v198 = vld [vmem:[%s3 + $0x8] sm:$0xf]
    %v199 = vld [vmem:[%s3 + $0xc] sm:$0xf]
    %v200 = vld [vmem:[%s3 + $0x10] sm:$0xf]
    %v201 = vld [vmem:[%s3 + $0x14] sm:$0xf]
    %v202 = vld [vmem:[%s3 + $0x18] sm:$0xf]
    %v203 = vld [vmem:[%s3 + $0x1c] sm:$0xf]
    %v204 = vld [vmem:[%s4] sm:$0x1]
    %v206 = vperm.slane %v204, 0
    %v216 = vunpack.c.l.b16 %v196
    %v217 = vunpack.c.l.b16 %v197
    %v218 = vunpack.c.l.b16 %v198
    %v219 = vunpack.c.l.b16 %v199
    %v220 = vunpack.c.l.b16 %v200
    %v221 = vunpack.c.l.b16 %v201
    %v222 = vunpack.c.l.b16 %v202
    %v223 = vunpack.c.l.b16 %v203
    %v224 = vpack.c.b16 %v217, %v216
    %v225 = vpack.c.b16 %v219, %v218
    %v226 = vpack.c.b16 %v221, %v220
    %v227 = vpack.c.b16 %v223, %v222
    %vm232 = vcmask 523264
    %v234 = vsel %vm232, %v195, 0
    %236 = vmatpush.bf16.msra.mxu0 0
    %237 = vmatpush.bf16.msra.mxu0 0
    %238 = vmatpush.bf16.msra.mxu0 0
    %239 = vmatpush.bf16.msra.mxu0 0
    %240 = vmatpush.bf16.msra.mxu0 %v227
    %241 = vmatpush.bf16.msra.mxu0 %v226
    %242 = vmatpush.bf16.msra.mxu0 %v225
    %243 = vmatpush.bf16.msra.mxu0 %v224
    %244 = vmatmul.bf16.gmra.mxu0 %v234
    %v245 = vpop.f32.mrf.mxu0
    %v246 = vadd.f32 %v206, %v245
    %v247 = vpop.f32.mrf.mxu0
    %248 = vdwg.mxu0
    %v249 = vmax.f32 %v246, 0.0
    %v250 = vpack.c.bf16 %v249, %v249
    %v251 = vld [vmem:[%s5] sm:$0xf]
    %v252 = vld [vmem:[%s5 + $0x4] sm:$0xf]
    %v253 = vld [vmem:[%s5 + $0x8] sm:$0xf]
    %v254 = vld [vmem:[%s5 + $0xc] sm:$0xf]
    %v255 = vld [vmem:[%s6] sm:$0x1]
    %v257 = vperm.slane %v255, 0
    %v263 = vunpack.c.l.b16 %v251
    %v264 = vunpack.c.l.b16 %v252
    %v265 = vunpack.c.l.b16 %v253
    %v266 = vunpack.c.l.b16 %v254
    %v267 = vpack.c.b16 %v264, %v263
    %v268 = vpack.c.b16 %v266, %v265
    %vm271 = vcmask 261120
    %v273 = vsel %vm271, %v250, 0
    %275 = vmatpush.bf16.msra.mxu0 0
    %276 = vmatpush.bf16.msra.mxu0 0
    %277 = vmatpush.bf16.msra.mxu0 0
    %278 = vmatpush.bf16.msra.mxu0 0
    %279 = vmatpush.bf16.msra.mxu0 0
    %280 = vmatpush.bf16.msra.mxu0 0
    %281 = vmatpush.bf16.msra.mxu0 %v268
    %282 = vmatpush.bf16.msra.mxu0 %v267
    %283 = vmatmul.bf16.gmra.mxu0 %v273
    %v284 = vpop.f32.mrf.mxu0
    %v285 = vadd.f32 %v257, %v284
    %v286 = vpop.f32.mrf.mxu0
    %287 = vdwg.mxu0
    %288 = vst [vmem:[#allocation2] sm:$0xff] %v285
    // Predicated region
    $region30: #{tpu_custom_call.1} parent=1 // pred_check
      _
    $region31: #{tpu_custom_call.1} parent=1 // pred_check_branch
      %290 = sbr.rel (0) target = $region33
    $region32: #{tpu_custom_call.1} parent=1 // pred_region
      %292 = vsyncadd [#allocation3], 0
      %s294 = sshll.u32 [#allocation2], 4
      %s295 = int_to_ptr.vmem [resolvable:$true] %s294
      %s296 = sshll.u32 %s7, 4
      %s297 = int_to_ptr.hbm [resolvable:$true] %s296
      %299 = dma.vmem_to_hbm [thread:$0]  %s295, 128, %s297, [#allocation3]
    $region33: #{tpu_custom_call.1} parent=1 // pred_fallthru
      _
    // Predicated region
    $region34: #{tpu_custom_call.1} parent=1 // pred_check
      _
    $region35: #{tpu_custom_call.1} parent=1 // pred_check_branch
      %301 = sbr.rel (0) target = $region37
    $region36: #{tpu_custom_call.1} parent=1 // pred_region
      %303 = dma.done [#allocation3], 128
    $region37: #{tpu_custom_call.1} parent=1 // pred_fallthru
      _
    %304 = vsyncpa [#allocation3], 1

</llo_original>
